<compile_context>
chip_gen: v5e
topology: v5e:2x2
jax: 0.10.0
libtpu: 0.0.40
codegen_flags: <defaults>
</compile_context>

<pallas_src>
import math

import jax
import jax.numpy as jnp
from jax.experimental import pallas as pl
from jax.experimental.pallas import tpu as pltpu

# ---- small shapes consistent with the module ----
BATCH = 2
SEQ = 8
D_MODEL = 32
MAX_SEQ_LENGTH = 16


def build_pe(d_model, max_seq_length, dtype=jnp.float32):
    """Sinusoidal positional-encoding buffer, identical to the PyTorch __init__."""
    position = jnp.arange(max_seq_length, dtype=jnp.float32)[:, None]            # (L, 1)
    div_term = jnp.exp(
        jnp.arange(0, d_model, 2, dtype=jnp.float32) * (-math.log(10000.0) / d_model)
    )                                                                             # (D/2,)
    angles = position * div_term                                                  # (L, D/2)
    pe = jnp.zeros((max_seq_length, d_model), jnp.float32)
    pe = pe.at[:, 0::2].set(jnp.sin(angles))
    pe = pe.at[:, 1::2].set(jnp.cos(angles))
    return pe[None, :, :].astype(dtype)                                           # (1, L, D)


# ---------------- Pallas kernel: broadcast add ----------------
def pe_add_kernel(x_ref, pe_ref, o_ref):
    # x_ref: (TB, S*D), pe_ref: (1, S*D) -> broadcast over the batch (sublane) dim.
    o_ref[...] = x_ref[...] + pe_ref[...]


def _pick_batch_tile(batch, row_bytes):
    """Batch tile: full batch when tiny, else a multiple of 8 capped so the
    x tile is ~2 MiB (=> ~8-9 MiB live with double-buffered x+out, safe under
    v5e's 16 MiB scoped-VMEM default and v7x's 64 MiB physical VMEM)."""
    if batch <= 8:
        return batch                      # block dim == full array dim -> legal
    budget = 2 * 1024 * 1024
    tb = max(8, (budget // max(row_bytes, 1)) // 8 * 8)
    return min(tb, (batch // 8) * 8)


def positional_encoding_pallas(x, pe):
    """x: (B, S, D); pe: (1, max_seq_length, D) (same dtype family)."""
    B, S, D = x.shape
    row = S * D
    pe_slice = pe[:, :S, :].astype(x.dtype)          # mirrors self.pe[:, :seq_len]

    # Lane-dense presentation: fold S*D into the lane axis (pure layout).
    x2 = x.reshape(B, row)
    pe2 = pe_slice.reshape(1, row)

    tb = _pick_batch_tile(B, row * x.dtype.itemsize)
    grid = (pl.cdiv(B, tb),)

    out2 = pl.pallas_call(
        pe_add_kernel,
        out_shape=jax.ShapeDtypeStruct((B, row), x.dtype),
        grid_spec=pltpu.PrefetchScalarGridSpec(
            num_scalar_prefetch=0,
            grid=grid,
            in_specs=[
                pl.BlockSpec((tb, row), lambda i: (i, 0)),   # x: tiled over batch
                pl.BlockSpec((1, row), lambda i: (0, 0)),    # pe: constant -> VMEM-resident
            ],
            out_specs=pl.BlockSpec((tb, row), lambda i: (i, 0)),
        ),
        compiler_params=pltpu.CompilerParams(
            dimension_semantics=("parallel",),
        ),
        input_output_aliases={0: 0},      # in-place add: reuse x's HBM buffer
    )(x2, pe2)

    return out2.reshape(B, S, D)


# ---------------- pure-JAX reference for verification ----------------
def positional_encoding_ref(x, pe):
    S = x.shape[1]
    return x + pe[:, :S, :].astype(x.dtype)


if __name__ == "__main__":
    key = jax.random.PRNGKey(0)
    x = jax.random.normal(key, (BATCH, SEQ, D_MODEL), jnp.float32)
    pe = build_pe(D_MODEL, MAX_SEQ_LENGTH)

    out = positional_encoding_pallas(x, pe)
    out = jax.block_until_ready(out)

    ref = jax.block_until_ready(positional_encoding_ref(x, pe))
    assert out.shape == (BATCH, SEQ, D_MODEL)
    assert jnp.allclose(out, ref, rtol=1e-6, atol=1e-6), "Pallas output mismatch vs JAX reference"

    print("KERNEL_OK")
</pallas_src>

<mosaic_0001>
module attributes {stable_mosaic.version = 11 : i64} {
  func.func @pe_add_kernel(%arg0: i32, %arg1: memref<2x256xf32, #tpu.memory_space<vmem>>, %arg2: memref<1x256xf32, #tpu.memory_space<vmem>>, %arg3: memref<2x256xf32, #tpu.memory_space<vmem>>) attributes {dimension_semantics = [#tpu.dimension_semantics<parallel>], iteration_bounds = array<i64: 1>, scalar_prefetch = 0 : i64, scratch_operands = 0 : i64, tpu.core_type = #tpu.core_type<tc>, window_params = [{transform_indices = @transform_0, window_bounds = array<i64: 2, 256>}, {pipeline_mode = #tpu.pipeline_mode<synchronous>, transform_indices = @transform_1, window_bounds = array<i64: 1, 256>}, {transform_indices = @transform_2, window_bounds = array<i64: 2, 256>}]} {
    %c0 = arith.constant 0 : index
    %c0_0 = arith.constant 0 : index
    %0 = vector.load %arg1[%c0, %c0_0] : memref<2x256xf32, #tpu.memory_space<vmem>>, vector<2x256xf32>
    %c0_1 = arith.constant 0 : index
    %c0_2 = arith.constant 0 : index
    %1 = vector.load %arg2[%c0_1, %c0_2] : memref<1x256xf32, #tpu.memory_space<vmem>>, vector<1x256xf32>
    %2 = vector.broadcast %1 : vector<1x256xf32> to vector<2x256xf32>
    %3 = arith.addf %0, %2 : vector<2x256xf32>
    %c0_3 = arith.constant 0 : index
    %c0_4 = arith.constant 0 : index
    %4 = vector.load %arg3[%c0_3, %c0_4] : memref<2x256xf32, #tpu.memory_space<vmem>>, vector<2x256xf32>
    tpu.vector_store %arg3[%c0_3, %c0_4], %3 {strides = array<i32>} : memref<2x256xf32, #tpu.memory_space<vmem>>, vector<2x256xf32>,
    return
  }
  func.func @transform_0(%arg0: i32) -> (i32, i32) {
    %c0_i32 = arith.constant 0 : i32
    %c0_i32_0 = arith.constant 0 : i32
    return %arg0, %c0_i32 : i32, i32
  }
  func.func @transform_1(%arg0: i32) -> (i32, i32) {
    %c0_i32 = arith.constant 0 : i32
    %c0_i32_0 = arith.constant 0 : i32
    %c0_i32_1 = arith.constant 0 : i32
    return %c0_i32, %c0_i32_0 : i32, i32
  }
  func.func @transform_2(%arg0: i32) -> (i32, i32) {
    %c0_i32 = arith.constant 0 : i32
    %c0_i32_0 = arith.constant 0 : i32
    return %arg0, %c0_i32 : i32, i32
  }
}

</mosaic_0001>

<llo_original>
// kernel: tpu_custom_call.1
$region0: #{tpu_custom_call.1}
  #allocation0 [shape = 'u32[]', space=smem, size = 0x4, offset = 0x4, fixed_abs, tag = 'smem constant byte address 0x4 - core index']
  #allocation1 [shape = 'u32[72,128]{1,0:T(1,128)}', space=vmem, size = 0x9000, scoped, tag = 'internal scratch']
  %s0 = inlined_call_operand.hbm [shape: f32[2,256], index: 0, kind: input, shape index: {}, may-alias: {0,2}]
  %s1 = inlined_call_operand.vmem [shape: f32[1,256], index: 1, kind: input, shape index: {}]
  %s2 = inlined_call_operand.hbm [shape: f32[2,256], index: 2, kind: output, shape index: {}, may-alias: {0,2}]
  %s3 = sld [smem:[#allocation0]]
  $region22: #{tpu_custom_call.1} parent=0
    _
  %s5 = ssub.s32 1, %s3
  %s6 = scalar_select 0, %s5, %s3
  $region1: #{tpu_custom_call.1} parent=0
    #allocation2 [shape = 'u8[2048]{0}', space=vmem, size = 0x800, scoped, tag = 'input window, operand 0, single buffered']
    #allocation3 [shape = 's32[1]{0}', space=sflag, size = 0x4, scoped, tag = 'scoped memory for tpu_custom_call.1']
    #allocation4 [shape = 's32[1]{0}', space=sflag, size = 0x4, scoped, tag = 'scoped memory for tpu_custom_call.1']
    #allocation5 [shape = 'u8[2048]{0}', space=vmem, size = 0x800, scoped, tag = 'output window, operand 0, single buffered']
    %7 = vsyncpa [#allocation3], 0
    %8 = vsyncpa [#allocation4], 0
    // Predicated region
    $region2: #{tpu_custom_call.1} parent=1 // pred_check
      _
    $region3: #{tpu_custom_call.1} parent=1 // pred_check_branch
      %10 = sbr.rel (0) target = $region5
    $region4: #{tpu_custom_call.1} parent=1 // pred_region
      %12 = vsyncadd [#allocation3], 0
      %s14 = sshll.u32 %s0, 4
      %s15 = int_to_ptr.hbm [resolvable:$true] %s14
      %s16 = sshll.u32 [#allocation2], 4
      %s17 = int_to_ptr.vmem [resolvable:$true] %s16
      %19 = dma.hbm_to_vmem [thread:$0]  %s15, 64, %s17, [#allocation3]
    $region5: #{tpu_custom_call.1} parent=1 // pred_fallthru
      _
    // Predicated region
    $region6: #{tpu_custom_call.1} parent=1 // pred_check
      _
    $region7: #{tpu_custom_call.1} parent=1 // pred_check_branch
      %21 = sbr.rel (0) target = $region9
    $region8: #{tpu_custom_call.1} parent=1 // pred_region
      _
    $region9: #{tpu_custom_call.1} parent=1 // pred_fallthru
      _
    // Predicated region
    $region10: #{tpu_custom_call.1} parent=1 // pred_check
      _
    $region11: #{tpu_custom_call.1} parent=1 // pred_check_branch
      %23 = sbr.rel (0) target = $region13
    $region12: #{tpu_custom_call.1} parent=1 // pred_region
      %25 = dma.done [#allocation3], 64
    $region13: #{tpu_custom_call.1} parent=1 // pred_fallthru
      _
    %v26 = vld [vmem:[#allocation2] sm:$0xf]
    %v27 = vld [vmem:[%s1] sm:$0x3]
    %v29 = vperm.slane %v27, 0
    %v30 = vperm.slane %v27, 1
    %v31 = vrot.slane %v30, 6
    %vm32 = vcmask 1041408
    %v33 = vsel %vm32, %v29, %v31
    %v35 = vadd.f32 %v26, %v33
    %36 = vst [vmem:[#allocation5] sm:$0xf] %v35
    // Predicated region
    $region14: #{tpu_custom_call.1} parent=1 // pred_check
      _
    $region15: #{tpu_custom_call.1} parent=1 // pred_check_branch
      %38 = sbr.rel (0) target = $region17
    $region16: #{tpu_custom_call.1} parent=1 // pred_region
      %40 = vsyncadd [#allocation4], 0
      %s42 = sshll.u32 [#allocation5], 4
      %s43 = int_to_ptr.vmem [resolvable:$true] %s42
      %s44 = sshll.u32 %s2, 4
      %s45 = int_to_ptr.hbm [resolvable:$true] %s44
      %47 = dma.vmem_to_hbm [thread:$0]  %s43, 64, %s45, [#allocation4]
    $region17: #{tpu_custom_call.1} parent=1 // pred_fallthru
      _
    // Predicated region
    $region18: #{tpu_custom_call.1} parent=1 // pred_check
      _
    $region19: #{tpu_custom_call.1} parent=1 // pred_check_branch
      %49 = sbr.rel (0) target = $region21
    $region20: #{tpu_custom_call.1} parent=1 // pred_region
      %51 = dma.done [#allocation4], 64
    $region21: #{tpu_custom_call.1} parent=1 // pred_fallthru
      _
    %52 = vsyncpa [#allocation3], 1
    %53 = vsyncpa [#allocation4], 1

</llo_original>
